<compile_context>
chip_gen: v5e
topology: v5e:2x2
jax: 0.10.0
libtpu: 0.0.40
codegen_flags: <defaults>
</compile_context>

<pallas_src>
import jax
import jax.numpy as jnp
from jax.experimental import pallas as pl
from jax.experimental.pallas import tpu as pltpu

_LANE = 128            # vreg lane width (last dim)
_SUBLANE_32BIT = 8     # vreg sublane count for 32-bit dtypes

# Conservative defaults, safe on every TPU generation (used only when
# pltpu.get_tpu_info() is unavailable).
_DEFAULT_TILE_BYTES = 4 * 1024 * 1024
_DEFAULT_VMEM_LIMIT = 32 * 1024 * 1024


def _cdiv(a, b):
    return -(-a // b)


def _round_up(x, m):
    return ((x + m - 1) // m) * m


def _budget():
    """(max_tile_bytes, vmem_limit_bytes), gated by physical VMEM size."""
    try:
        vmem = getattr(pltpu.get_tpu_info(), "vmem_capacity_bytes", None)
    except Exception:  # pragma: no cover - info query not available
        vmem = None
    if vmem is None:
        return _DEFAULT_TILE_BYTES, _DEFAULT_VMEM_LIMIT
    if vmem >= 100 * 1024 * 1024:
        # v5e / v6e: 128 MiB physical VMEM -> large tiles amortize the
        # ~0.35 us per-grid-step overhead.
        return 12 * 1024 * 1024, 64 * 1024 * 1024
    # v7x: 64 MiB physical VMEM per TensorCore -> stay under ~48 MiB scoped.
    return 6 * 1024 * 1024, 48 * 1024 * 1024


def _identity_kernel(x_ref, o_ref):
    # Pure pass-through of the current VMEM tile.  A concrete subclass would
    # replace this body with its per-tile compute.
    o_ref[...] = x_ref[...]


def _pallas_identity_slab(x2d):
    """Identity over a lane-dense 2D slab (cols % 128 == 0); rows arbitrary."""
    rows, cols = x2d.shape
    itemsize = jnp.dtype(x2d.dtype).itemsize
    # Dtype-aware sublane packing: 8 rows for 32-bit, 16 for bf16, 32 for int8.
    sublane = _SUBLANE_32BIT * max(1, 4 // itemsize)

    max_tile_bytes, vmem_limit = _budget()

    if rows <= sublane:
        # Tiny slab: one full-extent block (block dim == array dim is exempt
        # from the 8-row divisibility rule).
        tile_rows = rows
        grid = (1,)
    else:
        # Largest sublane-aligned tile under the per-block byte cap ...
        max_tile_rows = max(
            sublane, (max_tile_bytes // (cols * itemsize)) // sublane * sublane)
        # ... but keep at least 2 grid steps when there is enough work so the
        # "parallel" axis can be sharded across both v7x TensorCores.
        half_rows = _round_up(_cdiv(rows, 2), sublane)
        tile_rows = max(sublane, min(max_tile_rows, half_rows))
        # Non-divisible grid: Pallas masks the partial final block, so no
        # wrapper-side row padding / tail slicing is needed.
        grid = (_cdiv(rows, tile_rows),)

    nbytes = rows * cols * itemsize
    return pl.pallas_call(
        _identity_kernel,
        out_shape=jax.ShapeDtypeStruct((rows, cols), x2d.dtype),
        grid=grid,
        in_specs=[pl.BlockSpec((tile_rows, cols), lambda i: (i, 0))],
        out_specs=pl.BlockSpec((tile_rows, cols), lambda i: (i, 0)),
        compiler_params=pltpu.CompilerParams(
            dimension_semantics=("parallel",),
            vmem_limit_bytes=vmem_limit,
        ),
        cost_estimate=pl.CostEstimate(
            flops=0, transcendentals=0, bytes_accessed=2 * nbytes),
    )(x2d)


def pallas_identity(x):
    """Identity pass-through over an arbitrary-shape tensor (lane-dense slab)."""
    if x.size == 0:
        return x
    orig_shape = x.shape
    total = x.size

    # Fast path 1: last dim is already a multiple of 128 -> collapse leading
    # dims (layout-friendly) and run directly.  Zero pad / zero tail slice.
    if x.ndim >= 2 and orig_shape[-1] % _LANE == 0:
        y = _pallas_identity_slab(x.reshape(-1, orig_shape[-1]))
        return y.reshape(orig_shape)

    # Fast path 2: flattened size divisible by 128 -> pick the widest
    # lane-dense column count that divides it exactly.  No pad, no slice.
    for cols in (1024, 512, 256, _LANE):
        if total % cols == 0:
            y = _pallas_identity_slab(x.reshape(total // cols, cols))
            return y.reshape(orig_shape)

    # Ragged fallback (size not a multiple of 128): pad only the <=127-element
    # tail, run, slice back.
    # TODO(synk): this tail pad/slice still costs one extra HBM round-trip;
    # it is only taken for pathological, non-128-aligned sizes.
    padded = _round_up(total, _LANE)
    flat = jnp.pad(x.reshape(-1), (0, padded - total))
    y = _pallas_identity_slab(flat.reshape(padded // _LANE, _LANE))
    return y.reshape(-1)[:total].reshape(orig_shape)


_pallas_identity_jit = jax.jit(pallas_identity)


class BaseNet:
    """JAX mirror of the PyTorch BaseNet abstract base class."""

    def __init__(self):
        self._divisor = -1
        self._out_channels = -1
        # NOTE: _num_output_levels is intentionally NOT set here (parity with
        # the PyTorch class): accessing the property before a subclass sets it
        # raises AttributeError.

    @property
    def divisor(self):
        return self._divisor

    @property
    def out_channels(self):
        return self._out_channels

    @property
    def num_output_levels(self):
        return self._num_output_levels

    def forward(self, *inputs):
        # Abstract in the reference implementation.
        raise NotImplementedError

    # Concrete helper exercising the Pallas path: identity on any tensor.
    def _identity_forward(self, x: jnp.ndarray) -> jnp.ndarray:
        return _pallas_identity_jit(x)


if __name__ == "__main__":
    key = jax.random.PRNGKey(0)
    # Small NCHW input consistent with a conv-style backbone base class.
    x = jax.random.normal(key, (2, 4, 16, 16), dtype=jnp.float32)

    net = BaseNet()

    # Verify the abstract forward behaves like the PyTorch base class.
    try:
        net.forward(x)
        raise RuntimeError("forward should have raised NotImplementedError")
    except NotImplementedError:
        pass

    # Sanity-check the mirrored attribute properties.
    assert net.divisor == -1 and net.out_channels == -1

    # 1) Aligned total (fast path 2: 2048 elements -> (2, 1024) slab).
    y = net._identity_forward(x)
    jax.block_until_ready(y)
    assert y.shape == x.shape and y.dtype == x.dtype
    assert bool(jnp.all(y == x))

    # 2) Lane-dense last dim (fast path 1) with a packed dtype (bf16 -> 16-row
    #    sublane alignment) and a multi-block grid.
    x_ld = jax.random.normal(
        jax.random.PRNGKey(2), (2, 4, 8, 128), dtype=jnp.float32
    ).astype(jnp.bfloat16)
    y_ld = net._identity_forward(x_ld)
    jax.block_until_ready(y_ld)
    assert y_ld.shape == x_ld.shape and y_ld.dtype == x_ld.dtype
    assert bool(jnp.all(y_ld == x_ld))

    # 3) Ragged flattened size (3*5*7*11 = 1155, not a multiple of 128).
    x_rg = jax.random.normal(jax.random.PRNGKey(1), (3, 5, 7, 11), dtype=jnp.float32)
    y_rg = net._identity_forward(x_rg)
    jax.block_until_ready(y_rg)
    assert y_rg.shape == x_rg.shape and bool(jnp.all(y_rg == x_rg))

    print("KERNEL_OK")
</pallas_src>

<mosaic_0001>
module attributes {stable_mosaic.version = 11 : i64} {
  func.func @_identity_kernel(%arg0: i32, %arg1: memref<2x1024xf32, #tpu.memory_space<vmem>>, %arg2: memref<2x1024xf32, #tpu.memory_space<vmem>>) attributes {dimension_semantics = [#tpu.dimension_semantics<parallel>], iteration_bounds = array<i64: 1>, scalar_prefetch = 0 : i64, scratch_operands = 0 : i64, tpu.core_type = #tpu.core_type<tc>, window_params = [{transform_indices = @transform_0, window_bounds = array<i64: 2, 1024>}, {transform_indices = @transform_1, window_bounds = array<i64: 2, 1024>}]} {
    %c0 = arith.constant 0 : index
    %c0_0 = arith.constant 0 : index
    %0 = vector.load %arg1[%c0, %c0_0] : memref<2x1024xf32, #tpu.memory_space<vmem>>, vector<2x1024xf32>
    %c0_1 = arith.constant 0 : index
    %c0_2 = arith.constant 0 : index
    %1 = vector.load %arg2[%c0_1, %c0_2] : memref<2x1024xf32, #tpu.memory_space<vmem>>, vector<2x1024xf32>
    tpu.vector_store %arg2[%c0_1, %c0_2], %0 {strides = array<i32>} : memref<2x1024xf32, #tpu.memory_space<vmem>>, vector<2x1024xf32>,
    return
  }
  func.func @transform_0(%arg0: i32) -> (i32, i32) {
    %c0_i32 = arith.constant 0 : i32
    %c0_i32_0 = arith.constant 0 : i32
    return %arg0, %c0_i32 : i32, i32
  }
  func.func @transform_1(%arg0: i32) -> (i32, i32) {
    %c0_i32 = arith.constant 0 : i32
    %c0_i32_0 = arith.constant 0 : i32
    return %arg0, %c0_i32 : i32, i32
  }
}

</mosaic_0001>

<llo_original>
// kernel: pallas_identity.1
$region0: #{pallas_identity.1}
  #allocation0 [shape = 'u32[]', space=smem, size = 0x4, offset = 0x4, fixed_abs, tag = 'smem constant byte address 0x4 - core index']
  #allocation1 [shape = 'u32[72,128]{1,0:T(1,128)}', space=vmem, size = 0x9000, scoped, tag = 'internal scratch']
  %s0 = inlined_call_operand.vmem [shape: f32[2,1024], index: 0, kind: input, shape index: {}]
  %s1 = inlined_call_operand.vmem [shape: f32[2,1024], index: 1, kind: output, shape index: {}]
  %s2 = sld [smem:[#allocation0]]
  $region14: #{pallas_identity.1} parent=0
    _
  %s4 = ssub.s32 1, %s2
  %s5 = scalar_select 0, %s4, %s2
  // Predicated region
  $region2: #{pallas_identity.1} parent=0 // pred_check
    _
  $region3: #{pallas_identity.1} parent=0 // pred_check_branch
    %7 = sbr.rel (0) target = $region5
  $region4: #{pallas_identity.1} parent=0 // pred_region
    _
  $region5: #{pallas_identity.1} parent=0 // pred_fallthru
    _
  %v8 = vld [vmem:[%s0] sm:$0xff]
  %v9 = vld [vmem:[%s0 + $0x8] sm:$0xff]
  %10 = vst [vmem:[%s1] sm:$0xff] %v8
  %11 = vst [vmem:[%s1 + $0x8] sm:$0xff] %v9
  // Predicated region
  $region6: #{pallas_identity.1} parent=0 // pred_check
    _
  $region7: #{pallas_identity.1} parent=0 // pred_check_branch
    %13 = sbr.rel (0) target = $region9
  $region8: #{pallas_identity.1} parent=0 // pred_region
    _
  $region9: #{pallas_identity.1} parent=0 // pred_fallthru
    _
  // Predicated region
  $region10: #{pallas_identity.1} parent=0 // pred_check
    _
  $region11: #{pallas_identity.1} parent=0 // pred_check_branch
    %15 = sbr.rel (0) target = $region13
  $region12: #{pallas_identity.1} parent=0 // pred_region
    _
  $region13: #{pallas_identity.1} parent=0 // pred_fallthru
    _

</llo_original>
